<compile_context>
chip_gen: v7x
topology: tpu7x:2x2x1
jax: 0.10.0
libtpu: 0.0.40
codegen_flags: <defaults>
</compile_context>

<pallas_src>
import jax
import jax.numpy as jnp
from jax import lax
from jax.experimental import pallas as pl
from jax.experimental.pallas import tpu as pltpu

# problem sizes (small, lane-friendly: feature axes map to the 128-lane dim)
B = 8        # batch
D_IN = 128   # input feature dim
H = 128      # hidden dim of target x
C = 128      # number of constraints

MAX_ITERS = 50
STEP_SIZE = 0.01
DECAY = 0.99
EPS = 1e-6

N_CHUNK_STEPS = 5                      # unrolled projection steps per while-body
N_CHUNKS = MAX_ITERS // N_CHUNK_STEPS  # 10 chunks == 50 iterations


def grad_proj_kernel(inp_ref, wpre_ref, bpre_ref, m_ref, mt_ref, g_ref, b_ref,
                     x_out_ref, viol_out_ref):
    # ---- pre component: x0 = relu(inp @ W_pre + b_pre) ----
    x0 = jnp.maximum(
        jnp.dot(inp_ref[...], wpre_ref[...],
                preferred_element_type=jnp.float32) + bpre_ref[...],
        0.0)

    # Fused matrices precomputed in the wrapper (loop-invariant).
    m_mat = m_ref[...]     # (H, C)   : x @ M is the constraint slack map
    m_t = mt_ref[...]      # (C, H)
    g_mat = g_ref[...]     # (C, C)   : G = M^T @ M, drives the slack recurrence
    b_full = jnp.broadcast_to(b_ref[...], (B, C))   # hoisted out of the loop

    # Initial slack and its max.
    s0 = jnp.dot(x0, m_mat, preferred_element_type=jnp.float32) - b_full
    s0_max = jnp.max(s0)

    # ---- projection loop on the slack only ----
    # carry = (chunk, s, s_max, d, acc) with acc = sum_k d_k * mask_k.
    def cond(carry):
        chunk, _s, s_max, _d, _acc = carry
        # NOT(s_max < EPS): keeps iterating on NaN, matching the PyTorch loop
        # (viol.max() < eps is False on NaN).
        return jnp.logical_and(chunk < N_CHUNKS, jnp.logical_not(s_max < EPS))

    def body(carry):
        chunk, s, s_max, d, acc = carry
        # K unrolled steps, each gated on convergence so break-before-update
        # semantics are preserved; the max feeds a select, not a branch.
        for _ in range(N_CHUNK_STEPS):
            converged = s_max < EPS
            mask = (s > 0.0).astype(jnp.float32)          # d relu(s)/ds
            delta = jnp.dot(mask, g_mat, preferred_element_type=jnp.float32)
            s_new = s - (d * STEP_SIZE) * delta
            acc_new = acc + d * mask
            d_new = DECAY * d
            s = jnp.where(converged, s, s_new)
            acc = jnp.where(converged, acc, acc_new)
            d = jnp.where(converged, d, d_new)
            s_max = jnp.max(s)
        return (chunk + 1, s, s_max, d, acc)

    _, _, _, _, acc_fin = lax.while_loop(
        cond, body,
        (jnp.int32(0), s0, s0_max, jnp.float32(1.0), jnp.zeros_like(s0)))

    # Reconstruct x with a single matmul, then recompute the final slack
    # exactly from x_fin (no recurrence drift in the outputs).
    x_fin = x0 - STEP_SIZE * jnp.dot(acc_fin, m_t,
                                     preferred_element_type=jnp.float32)
    s_fin = jnp.dot(x_fin, m_mat, preferred_element_type=jnp.float32) - b_full

    x_out_ref[...] = x_fin
    viol_out_ref[...] = jnp.maximum(s_fin, 0.0)


def gradient_projection(inp, w_pre, b_pre, w_post, a_mat, b_vec):
    # One-time algebra hoisted out of the kernel (review item): the kernel's
    # while-loop region only ever sees the fused matrices.
    m_mat = jnp.dot(w_post, a_mat, preferred_element_type=jnp.float32)   # (H, C)
    m_t = m_mat.T                                                        # (C, H)
    g_mat = jnp.dot(m_t, m_mat, preferred_element_type=jnp.float32)      # (C, C)

    vmem = pl.BlockSpec(memory_space=pltpu.MemorySpace.VMEM)
    return pl.pallas_call(
        grad_proj_kernel,
        out_shape=(
            jax.ShapeDtypeStruct((B, H), jnp.float32),   # projected x
            jax.ShapeDtypeStruct((B, C), jnp.float32),   # final violation
        ),
        in_specs=[vmem] * 7,
        out_specs=(vmem, vmem),
    )(inp, w_pre, b_pre, m_mat, m_t, g_mat, b_vec)


def gradient_projection_ref(inp, w_pre, b_pre, w_post, a_mat, b_vec):
    """Pure-JAX reference mirroring the PyTorch loop semantics.

    Uses the (mathematically identical) fused matrix M = W_post @ A, but
    recomputes x and the slack explicitly every iteration — i.e. it does NOT
    use the kernel's slack recurrence — so it also validates the recurrence
    against the faithful loop structure of the original module.
    """
    x = jnp.maximum(inp @ w_pre + b_pre, 0.0)
    m = w_post @ a_mat
    m_t = m.T
    d = 1.0
    for _ in range(MAX_ITERS):
        s = x @ m - b_vec
        if float(jnp.max(s)) < EPS:            # viol.max() < eps  <=>  max(s) < eps
            break
        grad = (s > 0.0).astype(jnp.float32) @ m_t
        x = x - d * STEP_SIZE * grad
        d = DECAY * d
    s = x @ m - b_vec
    viol = jnp.maximum(s, 0.0)
    return x, viol


if __name__ == "__main__":
    key = jax.random.PRNGKey(0)
    k0, k1, k2, k3, k4, k5 = jax.random.split(key, 6)

    inp = jax.random.normal(k0, (B, D_IN), dtype=jnp.float32)
    w_pre = jax.random.normal(k1, (D_IN, H), dtype=jnp.float32) * 0.05
    b_pre = jax.random.normal(k2, (1, H), dtype=jnp.float32) * 0.05
    w_post = jax.random.normal(k3, (H, H), dtype=jnp.float32) * 0.05
    a_mat = jax.random.normal(k4, (H, C), dtype=jnp.float32) * 0.05
    b_vec = jnp.abs(jax.random.normal(k5, (1, C), dtype=jnp.float32)) * 0.1

    x_out, viol_out = gradient_projection(inp, w_pre, b_pre, w_post, a_mat, b_vec)
    jax.block_until_ready((x_out, viol_out))

    x_ref, viol_ref = gradient_projection_ref(inp, w_pre, b_pre, w_post, a_mat, b_vec)
    assert jnp.allclose(x_out, x_ref, rtol=1e-4, atol=1e-4), "x mismatch"
    assert jnp.allclose(viol_out, viol_ref, rtol=1e-4, atol=1e-4), "viol mismatch"

    print("KERNEL_OK")
</pallas_src>

<mosaic_0001>
module attributes {stable_mosaic.version = 11 : i64} {
  func.func @grad_proj_kernel(%arg0: memref<8x128xf32, #tpu.memory_space<vmem>>, %arg1: memref<128x128xf32, #tpu.memory_space<vmem>>, %arg2: memref<1x128xf32, #tpu.memory_space<vmem>>, %arg3: memref<128x128xf32, #tpu.memory_space<vmem>>, %arg4: memref<128x128xf32, #tpu.memory_space<vmem>>, %arg5: memref<128x128xf32, #tpu.memory_space<vmem>>, %arg6: memref<1x128xf32, #tpu.memory_space<vmem>>, %arg7: memref<8x128xf32, #tpu.memory_space<vmem>>, %arg8: memref<8x128xf32, #tpu.memory_space<vmem>>) attributes {dimension_semantics = [], scalar_prefetch = 0 : i64, scratch_operands = 0 : i64, tpu.core_type = #tpu.core_type<tc>} {
    %c0 = arith.constant 0 : index
    %c0_0 = arith.constant 0 : index
    %0 = vector.load %arg0[%c0, %c0_0] : memref<8x128xf32, #tpu.memory_space<vmem>>, vector<8x128xf32>
    %c0_1 = arith.constant 0 : index
    %c0_2 = arith.constant 0 : index
    %1 = vector.load %arg1[%c0_1, %c0_2] : memref<128x128xf32, #tpu.memory_space<vmem>>, vector<128x128xf32>
    %cst = arith.constant dense<0.000000e+00> : vector<8x128xf32>
    %2 = tpu.matmul %0, %1, %cst {dimension_numbers = #tpu.dot_dimension_numbers<[1], [0], [0], [1], [0, 0, 1, 1], [], []>} : vector<8x128xf32>, vector<128x128xf32>, vector<8x128xf32> -> vector<8x128xf32>
    %c0_3 = arith.constant 0 : index
    %c0_4 = arith.constant 0 : index
    %3 = vector.load %arg2[%c0_3, %c0_4] : memref<1x128xf32, #tpu.memory_space<vmem>>, vector<1x128xf32>
    %4 = vector.broadcast %3 : vector<1x128xf32> to vector<8x128xf32>
    %5 = arith.addf %2, %4 : vector<8x128xf32>
    %cst_5 = arith.constant 0.000000e+00 : f32
    %6 = vector.broadcast %cst_5 : f32 to vector<8x128xf32>
    %7 = arith.maximumf %5, %6 : vector<8x128xf32>
    %c0_6 = arith.constant 0 : index
    %c0_7 = arith.constant 0 : index
    %8 = vector.load %arg3[%c0_6, %c0_7] : memref<128x128xf32, #tpu.memory_space<vmem>>, vector<128x128xf32>
    %c0_8 = arith.constant 0 : index
    %c0_9 = arith.constant 0 : index
    %9 = vector.load %arg4[%c0_8, %c0_9] : memref<128x128xf32, #tpu.memory_space<vmem>>, vector<128x128xf32>
    %c0_10 = arith.constant 0 : index
    %c0_11 = arith.constant 0 : index
    %10 = vector.load %arg5[%c0_10, %c0_11] : memref<128x128xf32, #tpu.memory_space<vmem>>, vector<128x128xf32>
    %c0_12 = arith.constant 0 : index
    %c0_13 = arith.constant 0 : index
    %11 = vector.load %arg6[%c0_12, %c0_13] : memref<1x128xf32, #tpu.memory_space<vmem>>, vector<1x128xf32>
    %12 = vector.shape_cast %11 : vector<1x128xf32> to vector<1x128xf32>
    %13 = vector.broadcast %12 : vector<1x128xf32> to vector<8x128xf32>
    %cst_14 = arith.constant dense<0.000000e+00> : vector<8x128xf32>
    %14 = tpu.matmul %7, %8, %cst_14 {dimension_numbers = #tpu.dot_dimension_numbers<[1], [0], [0], [1], [0, 0, 1, 1], [], []>} : vector<8x128xf32>, vector<128x128xf32>, vector<8x128xf32> -> vector<8x128xf32>
    %15 = arith.subf %14, %13 : vector<8x128xf32>
    %16 = vector.shape_cast %15 : vector<8x128xf32> to vector<1x8x128xf32>
    %cst_15 = arith.constant dense<0xFF800000> : vector<1xf32>
    %17 = vector.multi_reduction <maximumf>, %16, %cst_15 [1, 2] : vector<1x8x128xf32> to vector<1xf32>
    %18 = vector.shape_cast %17 : vector<1xf32> to vector<1x1x1xf32>
    %19 = vector.extract %18[0, 0, 0] : f32 from vector<1x1x1xf32>
    %cst_16 = arith.constant 0.000000e+00 : f32
    %20 = vector.broadcast %cst_16 : f32 to vector<8x128xf32>
    %c0_i32 = arith.constant 0 : i32
    %cst_17 = arith.constant 1.000000e+00 : f32
    %21:5 = scf.while (%arg9 = %c0_i32, %arg10 = %15, %arg11 = %19, %arg12 = %cst_17, %arg13 = %20) : (i32, vector<8x128xf32>, f32, f32, vector<8x128xf32>) -> (i32, vector<8x128xf32>, f32, f32, vector<8x128xf32>) {
      %c10_i32 = arith.constant 10 : i32
      %32 = arith.cmpi slt, %arg9, %c10_i32 : i32
      %cst_26 = arith.constant 9.99999997E-7 : f32
      %33 = arith.cmpf olt, %arg11, %cst_26 : f32
      %true = arith.constant true
      %34 = arith.xori %33, %true : i1
      %35 = arith.andi %32, %34 : i1
      scf.condition(%35) %arg9, %arg10, %arg11, %arg12, %arg13 : i32, vector<8x128xf32>, f32, f32, vector<8x128xf32>
    } do {
    ^bb0(%arg9: i32, %arg10: vector<8x128xf32>, %arg11: f32, %arg12: f32, %arg13: vector<8x128xf32>):
      %cst_26 = arith.constant 9.99999997E-7 : f32
      %32 = arith.cmpf olt, %arg11, %cst_26 : f32
      %cst_27 = arith.constant 0.000000e+00 : f32
      %33 = vector.broadcast %cst_27 : f32 to vector<8x128xf32>
      %34 = arith.cmpf ogt, %arg10, %33 : vector<8x128xf32>
      %35 = arith.extui %34 : vector<8x128xi1> to vector<8x128xi32>
      %36 = arith.sitofp %35 : vector<8x128xi32> to vector<8x128xf32>
      %cst_28 = arith.constant dense<0.000000e+00> : vector<8x128xf32>
      %37 = tpu.matmul %36, %10, %cst_28 {dimension_numbers = #tpu.dot_dimension_numbers<[1], [0], [0], [1], [0, 0, 1, 1], [], []>} : vector<8x128xf32>, vector<128x128xf32>, vector<8x128xf32> -> vector<8x128xf32>
      %cst_29 = arith.constant 0.00999999977 : f32
      %38 = arith.mulf %arg12, %cst_29 : f32
      %39 = vector.broadcast %38 : f32 to vector<8x128xf32>
      %40 = arith.mulf %39, %37 : vector<8x128xf32>
      %41 = arith.subf %arg10, %40 : vector<8x128xf32>
      %42 = vector.broadcast %arg12 : f32 to vector<8x128xf32>
      %43 = arith.mulf %42, %36 : vector<8x128xf32>
      %44 = arith.addf %arg13, %43 : vector<8x128xf32>
      %cst_30 = arith.constant 9.900000e-01 : f32
      %45 = arith.mulf %cst_30, %arg12 : f32
      %46 = arith.select %32, %arg10, %41 : vector<8x128xf32>
      %47 = arith.select %32, %arg13, %44 : vector<8x128xf32>
      %48 = arith.select %32, %arg12, %45 : f32
      %49 = vector.shape_cast %46 : vector<8x128xf32> to vector<1x8x128xf32>
      %cst_31 = arith.constant dense<0xFF800000> : vector<1xf32>
      %50 = vector.multi_reduction <maximumf>, %49, %cst_31 [1, 2] : vector<1x8x128xf32> to vector<1xf32>
      %51 = vector.shape_cast %50 : vector<1xf32> to vector<1x1x1xf32>
      %52 = vector.extract %51[0, 0, 0] : f32 from vector<1x1x1xf32>
      %cst_32 = arith.constant 9.99999997E-7 : f32
      %53 = arith.cmpf olt, %52, %cst_32 : f32
      %cst_33 = arith.constant 0.000000e+00 : f32
      %54 = vector.broadcast %cst_33 : f32 to vector<8x128xf32>
      %55 = arith.cmpf ogt, %46, %54 : vector<8x128xf32>
      %56 = arith.extui %55 : vector<8x128xi1> to vector<8x128xi32>
      %57 = arith.sitofp %56 : vector<8x128xi32> to vector<8x128xf32>
      %cst_34 = arith.constant dense<0.000000e+00> : vector<8x128xf32>
      %58 = tpu.matmul %57, %10, %cst_34 {dimension_numbers = #tpu.dot_dimension_numbers<[1], [0], [0], [1], [0, 0, 1, 1], [], []>} : vector<8x128xf32>, vector<128x128xf32>, vector<8x128xf32> -> vector<8x128xf32>
      %cst_35 = arith.constant 0.00999999977 : f32
      %59 = arith.mulf %48, %cst_35 : f32
      %60 = vector.broadcast %59 : f32 to vector<8x128xf32>
      %61 = arith.mulf %60, %58 : vector<8x128xf32>
      %62 = arith.subf %46, %61 : vector<8x128xf32>
      %63 = vector.broadcast %48 : f32 to vector<8x128xf32>
      %64 = arith.mulf %63, %57 : vector<8x128xf32>
      %65 = arith.addf %47, %64 : vector<8x128xf32>
      %cst_36 = arith.constant 9.900000e-01 : f32
      %66 = arith.mulf %cst_36, %48 : f32
      %67 = arith.select %53, %46, %62 : vector<8x128xf32>
      %68 = arith.select %53, %47, %65 : vector<8x128xf32>
      %69 = arith.select %53, %48, %66 : f32
      %70 = vector.shape_cast %67 : vector<8x128xf32> to vector<1x8x128xf32>
      %cst_37 = arith.constant dense<0xFF800000> : vector<1xf32>
      %71 = vector.multi_reduction <maximumf>, %70, %cst_37 [1, 2] : vector<1x8x128xf32> to vector<1xf32>
      %72 = vector.shape_cast %71 : vector<1xf32> to vector<1x1x1xf32>
      %73 = vector.extract %72[0, 0, 0] : f32 from vector<1x1x1xf32>
      %cst_38 = arith.constant 9.99999997E-7 : f32
      %74 = arith.cmpf olt, %73, %cst_38 : f32
      %cst_39 = arith.constant 0.000000e+00 : f32
      %75 = vector.broadcast %cst_39 : f32 to vector<8x128xf32>
      %76 = arith.cmpf ogt, %67, %75 : vector<8x128xf32>
      %77 = arith.extui %76 : vector<8x128xi1> to vector<8x128xi32>
      %78 = arith.sitofp %77 : vector<8x128xi32> to vector<8x128xf32>
      %cst_40 = arith.constant dense<0.000000e+00> : vector<8x128xf32>
      %79 = tpu.matmul %78, %10, %cst_40 {dimension_numbers = #tpu.dot_dimension_numbers<[1], [0], [0], [1], [0, 0, 1, 1], [], []>} : vector<8x128xf32>, vector<128x128xf32>, vector<8x128xf32> -> vector<8x128xf32>
      %cst_41 = arith.constant 0.00999999977 : f32
      %80 = arith.mulf %69, %cst_41 : f32
      %81 = vector.broadcast %80 : f32 to vector<8x128xf32>
      %82 = arith.mulf %81, %79 : vector<8x128xf32>
      %83 = arith.subf %67, %82 : vector<8x128xf32>
      %84 = vector.broadcast %69 : f32 to vector<8x128xf32>
      %85 = arith.mulf %84, %78 : vector<8x128xf32>
      %86 = arith.addf %68, %85 : vector<8x128xf32>
      %cst_42 = arith.constant 9.900000e-01 : f32
      %87 = arith.mulf %cst_42, %69 : f32
      %88 = arith.select %74, %67, %83 : vector<8x128xf32>
      %89 = arith.select %74, %68, %86 : vector<8x128xf32>
      %90 = arith.select %74, %69, %87 : f32
      %91 = vector.shape_cast %88 : vector<8x128xf32> to vector<1x8x128xf32>
      %cst_43 = arith.constant dense<0xFF800000> : vector<1xf32>
      %92 = vector.multi_reduction <maximumf>, %91, %cst_43 [1, 2] : vector<1x8x128xf32> to vector<1xf32>
      %93 = vector.shape_cast %92 : vector<1xf32> to vector<1x1x1xf32>
      %94 = vector.extract %93[0, 0, 0] : f32 from vector<1x1x1xf32>
      %cst_44 = arith.constant 9.99999997E-7 : f32
      %95 = arith.cmpf olt, %94, %cst_44 : f32
      %cst_45 = arith.constant 0.000000e+00 : f32
      %96 = vector.broadcast %cst_45 : f32 to vector<8x128xf32>
      %97 = arith.cmpf ogt, %88, %96 : vector<8x128xf32>
      %98 = arith.extui %97 : vector<8x128xi1> to vector<8x128xi32>
      %99 = arith.sitofp %98 : vector<8x128xi32> to vector<8x128xf32>
      %cst_46 = arith.constant dense<0.000000e+00> : vector<8x128xf32>
      %100 = tpu.matmul %99, %10, %cst_46 {dimension_numbers = #tpu.dot_dimension_numbers<[1], [0], [0], [1], [0, 0, 1, 1], [], []>} : vector<8x128xf32>, vector<128x128xf32>, vector<8x128xf32> -> vector<8x128xf32>
      %cst_47 = arith.constant 0.00999999977 : f32
      %101 = arith.mulf %90, %cst_47 : f32
      %102 = vector.broadcast %101 : f32 to vector<8x128xf32>
      %103 = arith.mulf %102, %100 : vector<8x128xf32>
      %104 = arith.subf %88, %103 : vector<8x128xf32>
      %105 = vector.broadcast %90 : f32 to vector<8x128xf32>
      %106 = arith.mulf %105, %99 : vector<8x128xf32>
      %107 = arith.addf %89, %106 : vector<8x128xf32>
      %cst_48 = arith.constant 9.900000e-01 : f32
      %108 = arith.mulf %cst_48, %90 : f32
      %109 = arith.select %95, %88, %104 : vector<8x128xf32>
      %110 = arith.select %95, %89, %107 : vector<8x128xf32>
      %111 = arith.select %95, %90, %108 : f32
      %112 = vector.shape_cast %109 : vector<8x128xf32> to vector<1x8x128xf32>
      %cst_49 = arith.constant dense<0xFF800000> : vector<1xf32>
      %113 = vector.multi_reduction <maximumf>, %112, %cst_49 [1, 2] : vector<1x8x128xf32> to vector<1xf32>
      %114 = vector.shape_cast %113 : vector<1xf32> to vector<1x1x1xf32>
      %115 = vector.extract %114[0, 0, 0] : f32 from vector<1x1x1xf32>
      %cst_50 = arith.constant 9.99999997E-7 : f32
      %116 = arith.cmpf olt, %115, %cst_50 : f32
      %cst_51 = arith.constant 0.000000e+00 : f32
      %117 = vector.broadcast %cst_51 : f32 to vector<8x128xf32>
      %118 = arith.cmpf ogt, %109, %117 : vector<8x128xf32>
      %119 = arith.extui %118 : vector<8x128xi1> to vector<8x128xi32>
      %120 = arith.sitofp %119 : vector<8x128xi32> to vector<8x128xf32>
      %cst_52 = arith.constant dense<0.000000e+00> : vector<8x128xf32>
      %121 = tpu.matmul %120, %10, %cst_52 {dimension_numbers = #tpu.dot_dimension_numbers<[1], [0], [0], [1], [0, 0, 1, 1], [], []>} : vector<8x128xf32>, vector<128x128xf32>, vector<8x128xf32> -> vector<8x128xf32>
      %cst_53 = arith.constant 0.00999999977 : f32
      %122 = arith.mulf %111, %cst_53 : f32
      %123 = vector.broadcast %122 : f32 to vector<8x128xf32>
      %124 = arith.mulf %123, %121 : vector<8x128xf32>
      %125 = arith.subf %109, %124 : vector<8x128xf32>
      %126 = vector.broadcast %111 : f32 to vector<8x128xf32>
      %127 = arith.mulf %126, %120 : vector<8x128xf32>
      %128 = arith.addf %110, %127 : vector<8x128xf32>
      %cst_54 = arith.constant 9.900000e-01 : f32
      %129 = arith.mulf %cst_54, %111 : f32
      %130 = arith.select %116, %109, %125 : vector<8x128xf32>
      %131 = arith.select %116, %110, %128 : vector<8x128xf32>
      %132 = arith.select %116, %111, %129 : f32
      %133 = vector.shape_cast %130 : vector<8x128xf32> to vector<1x8x128xf32>
      %cst_55 = arith.constant dense<0xFF800000> : vector<1xf32>
      %134 = vector.multi_reduction <maximumf>, %133, %cst_55 [1, 2] : vector<1x8x128xf32> to vector<1xf32>
      %135 = vector.shape_cast %134 : vector<1xf32> to vector<1x1x1xf32>
      %136 = vector.extract %135[0, 0, 0] : f32 from vector<1x1x1xf32>
      %c1_i32 = arith.constant 1 : i32
      %137 = arith.addi %arg9, %c1_i32 : i32
      scf.yield %137, %130, %136, %132, %131 : i32, vector<8x128xf32>, f32, f32, vector<8x128xf32>
    }
    %cst_18 = arith.constant dense<0.000000e+00> : vector<8x128xf32>
    %22 = tpu.matmul %21#4, %9, %cst_18 {dimension_numbers = #tpu.dot_dimension_numbers<[1], [0], [0], [1], [0, 0, 1, 1], [], []>} : vector<8x128xf32>, vector<128x128xf32>, vector<8x128xf32> -> vector<8x128xf32>
    %cst_19 = arith.constant 0.00999999977 : f32
    %23 = vector.broadcast %cst_19 : f32 to vector<8x128xf32>
    %24 = arith.mulf %23, %22 : vector<8x128xf32>
    %25 = arith.subf %7, %24 : vector<8x128xf32>
    %cst_20 = arith.constant dense<0.000000e+00> : vector<8x128xf32>
    %26 = tpu.matmul %25, %8, %cst_20 {dimension_numbers = #tpu.dot_dimension_numbers<[1], [0], [0], [1], [0, 0, 1, 1], [], []>} : vector<8x128xf32>, vector<128x128xf32>, vector<8x128xf32> -> vector<8x128xf32>
    %27 = arith.subf %26, %13 : vector<8x128xf32>
    %c0_21 = arith.constant 0 : index
    %c0_22 = arith.constant 0 : index
    %28 = vector.load %arg7[%c0_21, %c0_22] : memref<8x128xf32, #tpu.memory_space<vmem>>, vector<8x128xf32>
    tpu.vector_store %arg7[%c0_21, %c0_22], %25 {strides = array<i32>} : memref<8x128xf32, #tpu.memory_space<vmem>>, vector<8x128xf32>,
    %cst_23 = arith.constant 0.000000e+00 : f32
    %29 = vector.broadcast %cst_23 : f32 to vector<8x128xf32>
    %30 = arith.maximumf %27, %29 : vector<8x128xf32>
    %c0_24 = arith.constant 0 : index
    %c0_25 = arith.constant 0 : index
    %31 = vector.load %arg8[%c0_24, %c0_25] : memref<8x128xf32, #tpu.memory_space<vmem>>, vector<8x128xf32>
    tpu.vector_store %arg8[%c0_24, %c0_25], %30 {strides = array<i32>} : memref<8x128xf32, #tpu.memory_space<vmem>>, vector<8x128xf32>,
    return
  }
}

</mosaic_0001>

<llo_original>
// kernel: tpu_custom_call.1
$region0: #{tpu_custom_call.1}
  #allocation0 [shape = 'u32[]', space=smem, size = 0x4, offset = 0x4, fixed_abs, tag = 'smem constant byte address 0x4 - core index']
  #allocation1 [shape = 'u32[144,128]{1,0:T(1,128)}', space=vmem, size = 0x12000, scoped, tag = 'internal scratch']
  %s0 = inlined_call_operand.hbm [shape: f32[8,128], index: 0, kind: input, shape index: {}]
  %s1 = inlined_call_operand.hbm [shape: f32[128,128], index: 1, kind: input, shape index: {}]
  %s2 = inlined_call_operand.vmem [shape: f32[1,128], index: 2, kind: input, shape index: {}]
  %s3 = inlined_call_operand.hbm [shape: f32[128,128], index: 3, kind: input, shape index: {}]
  %s4 = inlined_call_operand.hbm [shape: f32[128,128], index: 4, kind: input, shape index: {}]
  %s5 = inlined_call_operand.hbm [shape: f32[128,128], index: 5, kind: input, shape index: {}]
  %s6 = inlined_call_operand.vmem [shape: f32[1,128], index: 6, kind: input, shape index: {}]
  %s7 = inlined_call_operand.hbm [shape: f32[8,128], index: 7, kind: output, shape index: {0}]
  %s8 = inlined_call_operand.hbm [shape: f32[8,128], index: 8, kind: output, shape index: {1}]
  %9 = xla_tuple %s7, %s8
  %s10 = sld [smem:[#allocation0]]
  $region73: #{tpu_custom_call.1} parent=0
    _
  %s12 = ssub.s32 1, %s10
  %s13 = scalar_select 0, %s12, %s10
  $region1: #{tpu_custom_call.1} parent=0
    #allocation2 [shape = 'u8[4096]{0}', space=vmem, size = 0x1000, scoped, tag = 'input window, operand 0, single buffered']
    #allocation3 [shape = 's32[1]{0}', space=sflag, size = 0x4, scoped, tag = 'scoped memory for tpu_custom_call.1']
    #allocation4 [shape = 's32[1]{0}', space=sflag, size = 0x4, scoped, tag = 'scoped memory for tpu_custom_call.1']
    #allocation5 [shape = 'u8[65536]{0}', space=vmem, size = 0x10000, scoped, tag = 'input window, operand 1, single buffered']
    #allocation6 [shape = 's32[1]{0}', space=sflag, size = 0x4, scoped, tag = 'scoped memory for tpu_custom_call.1']
    #allocation7 [shape = 'u8[65536]{0}', space=vmem, size = 0x10000, scoped, tag = 'input window, operand 3, single buffered']
    #allocation8 [shape = 'u8[65536]{0}', space=vmem, size = 0x10000, scoped, tag = 'input window, operand 4, single buffered']
    #allocation9 [shape = 's32[1]{0}', space=sflag, size = 0x4, scoped, tag = 'scoped memory for tpu_custom_call.1']
    #allocation10 [shape = 'u8[65536]{0}', space=vmem, size = 0x10000, scoped, tag = 'input window, operand 5, single buffered']
    #allocation11 [shape = 'u8[4096]{0}', space=vmem, size = 0x1000, scoped, tag = 'output window, operand 0, single buffered']
    #allocation12 [shape = 'u8[4096]{0}', space=vmem, size = 0x1000, scoped, tag = 'output window, operand 1, single buffered']
    #allocation13 [shape = 's32[1]{0}', space=sflag, size = 0x4, scoped, tag = 'scoped memory for tpu_custom_call.1']
    %14 = vsyncpa [#allocation3], 0
    %15 = vsyncpa [#allocation6], 0
    %16 = vsyncpa [#allocation9], 0
    %17 = vsyncpa [#allocation4], 0
    %18 = vsyncpa [#allocation13], 0
    // Predicated region
    $region2: #{tpu_custom_call.1} parent=1 // pred_check
      _
    $region3: #{tpu_custom_call.1} parent=1 // pred_check_branch
      %20 = sbr.rel (0) target = $region5
    $region4: #{tpu_custom_call.1} parent=1 // pred_region
      %s22 = ssub.s32 128, 128
      %23 = vsyncadd [#allocation3], %s22
      %s25 = sshll.u32 [#allocation2], 4
      %s26 = int_to_ptr.vmem [resolvable:$true] %s25
      %28 = dma.hbm_to_vmem [thread:$0]  %s0, 128, %s26, [#allocation3]
    $region5: #{tpu_custom_call.1} parent=1 // pred_fallthru
      _
    // Predicated region
    $region6: #{tpu_custom_call.1} parent=1 // pred_check
      _
    $region7: #{tpu_custom_call.1} parent=1 // pred_check_branch
      %30 = sbr.rel (0) target = $region9
    $region8: #{tpu_custom_call.1} parent=1 // pred_region
      %s32 = ssub.s32 2048, 2048
      %33 = vsyncadd [#allocation6], %s32
      %s34 = sshll.u32 [#allocation5], 4
      %s35 = int_to_ptr.vmem [resolvable:$true] %s34
      %40 = dma.hbm_to_vmem [thread:$0]  %s1, 2048, %s35, [#allocation6], 128, 128, 8
    $region9: #{tpu_custom_call.1} parent=1 // pred_fallthru
      _
    // Predicated region
    $region10: #{tpu_custom_call.1} parent=1 // pred_check
      _
    $region11: #{tpu_custom_call.1} parent=1 // pred_check_branch
      %42 = sbr.rel (0) target = $region13
    $region12: #{tpu_custom_call.1} parent=1 // pred_region
      _
    $region13: #{tpu_custom_call.1} parent=1 // pred_fallthru
      _
    // Predicated region
    $region14: #{tpu_custom_call.1} parent=1 // pred_check
      _
    $region15: #{tpu_custom_call.1} parent=1 // pred_check_branch
      %44 = sbr.rel (0) target = $region17
    $region16: #{tpu_custom_call.1} parent=1 // pred_region
      %s46 = ssub.s32 2048, 2048
      %47 = vsyncadd [#allocation6], %s46
      %s48 = sshll.u32 [#allocation7], 4
      %s49 = int_to_ptr.vmem [resolvable:$true] %s48
      %54 = dma.hbm_to_vmem [thread:$0]  %s3, 2048, %s49, [#allocation6], 128, 128, 8
    $region17: #{tpu_custom_call.1} parent=1 // pred_fallthru
      _
    // Predicated region
    $region18: #{tpu_custom_call.1} parent=1 // pred_check
      _
    $region19: #{tpu_custom_call.1} parent=1 // pred_check_branch
      %56 = sbr.rel (0) target = $region21
    $region20: #{tpu_custom_call.1} parent=1 // pred_region
      %s58 = ssub.s32 2048, 2048
      %59 = vsyncadd [#allocation9], %s58
      %s60 = sshll.u32 [#allocation8], 4
      %s61 = int_to_ptr.vmem [resolvable:$true] %s60
      %66 = dma.hbm_to_vmem [thread:$0]  %s4, 2048, %s61, [#allocation9], 128, 128, 8
    $region21: #{tpu_custom_call.1} parent=1 // pred_fallthru
      _
    // Predicated region
    $region22: #{tpu_custom_call.1} parent=1 // pred_check
      _
    $region23: #{tpu_custom_call.1} parent=1 // pred_check_branch
      %68 = sbr.rel (0) target = $region25
    $region24: #{tpu_custom_call.1} parent=1 // pred_region
      %s70 = ssub.s32 2048, 2048
      %71 = vsyncadd [#allocation9], %s70
      %s72 = sshll.u32 [#allocation10], 4
      %s73 = int_to_ptr.vmem [resolvable:$true] %s72
      %78 = dma.hbm_to_vmem [thread:$0]  %s5, 2048, %s73, [#allocation9], 128, 128, 8
    $region25: #{tpu_custom_call.1} parent=1 // pred_fallthru
      _
    // Predicated region
    $region26: #{tpu_custom_call.1} parent=1 // pred_check
      _
    $region27: #{tpu_custom_call.1} parent=1 // pred_check_branch
      %80 = sbr.rel (0) target = $region29
    $region28: #{tpu_custom_call.1} parent=1 // pred_region
      _
    $region29: #{tpu_custom_call.1} parent=1 // pred_fallthru
      _
    // Predicated region
    $region30: #{tpu_custom_call.1} parent=1 // pred_check
      _
    $region31: #{tpu_custom_call.1} parent=1 // pred_check_branch
      %82 = sbr.rel (0) target = $region33
    $region32: #{tpu_custom_call.1} parent=1 // pred_region
      %83 = dma.done [#allocation3], 128
    $region33: #{tpu_custom_call.1} parent=1 // pred_fallthru
      _
    // Predicated region
    $region34: #{tpu_custom_call.1} parent=1 // pred_check
      _
    $region35: #{tpu_custom_call.1} parent=1 // pred_check_branch
      %85 = sbr.rel (0) target = $region37
    $region36: #{tpu_custom_call.1} parent=1 // pred_region
      %86 = dma.done [#allocation6], 2048
    $region37: #{tpu_custom_call.1} parent=1 // pred_fallthru
      _
    // Predicated region
    $region38: #{tpu_custom_call.1} parent=1 // pred_check
      _
    $region39: #{tpu_custom_call.1} parent=1 // pred_check_branch
      %88 = sbr.rel (0) target = $region41
    $region40: #{tpu_custom_call.1} parent=1 // pred_region
      %89 = dma.done [#allocation6], 2048
    $region41: #{tpu_custom_call.1} parent=1 // pred_fallthru
      _
    // Predicated region
    $region42: #{tpu_custom_call.1} parent=1 // pred_check
      _
    $region43: #{tpu_custom_call.1} parent=1 // pred_check_branch
      %91 = sbr.rel (0) target = $region45
    $region44: #{tpu_custom_call.1} parent=1 // pred_region
      %92 = dma.done [#allocation9], 2048
    $region45: #{tpu_custom_call.1} parent=1 // pred_fallthru
      _
    // Predicated region
    $region46: #{tpu_custom_call.1} parent=1 // pred_check
      _
    $region47: #{tpu_custom_call.1} parent=1 // pred_check_branch
      %94 = sbr.rel (0) target = $region49
    $region48: #{tpu_custom_call.1} parent=1 // pred_region
      %95 = dma.done [#allocation9], 2048
    $region49: #{tpu_custom_call.1} parent=1 // pred_fallthru
      _
    %v96 = vld [vmem:[#allocation2] sm:$0xff]
    %v97 = vld [vmem:[#allocation5] sm:$0xff]
    %v98 = vld [vmem:[#allocation5 + $0x8] sm:$0xff]
    %v99 = vld [vmem:[#allocation5 + $0x10] sm:$0xff]
    %v100 = vld [vmem:[#allocation5 + $0x18] sm:$0xff]
    %v101 = vld [vmem:[#allocation5 + $0x20] sm:$0xff]
    %v102 = vld [vmem:[#allocation5 + $0x28] sm:$0xff]
    %v103 = vld [vmem:[#allocation5 + $0x30] sm:$0xff]
    %v104 = vld [vmem:[#allocation5 + $0x38] sm:$0xff]
    %v105 = vld [vmem:[#allocation5 + $0x40] sm:$0xff]
    %v106 = vld [vmem:[#allocation5 + $0x48] sm:$0xff]
    %v107 = vld [vmem:[#allocation5 + $0x50] sm:$0xff]
    %v108 = vld [vmem:[#allocation5 + $0x58] sm:$0xff]
    %v109 = vld [vmem:[#allocation5 + $0x60] sm:$0xff]
    %v110 = vld [vmem:[#allocation5 + $0x68] sm:$0xff]
    %v111 = vld [vmem:[#allocation5 + $0x70] sm:$0xff]
    %v112 = vld [vmem:[#allocation5 + $0x78] sm:$0xff]
    %v113 = vld [vmem:[%s2] sm:$0x1]
    %v115 = vlaneseq
    %v116 = vshrl.u32 %v115, 7
    %v117 = vsub.s32 0, %v116
    %v118 = vrot.slane %v113, %v117
    %120 = vmatprep.subr.mxu0 0.0
    %121 = vmatpush1.msra.mxu0 %v97
    %122 = vmatprep.subr.mxu0 0.0
    %123 = vmatpush1.msra.mxu0 %v98
    %124 = vmatprep.subr.mxu0 0.0
    %125 = vmatpush1.msra.mxu0 %v99
    %126 = vmatprep.subr.mxu0 0.0
    %127 = vmatpush1.msra.mxu0 %v100
    %128 = vmatprep.subr.mxu0 0.0
    %129 = vmatpush1.msra.mxu0 %v101
    %130 = vmatprep.subr.mxu0 0.0
    %131 = vmatpush1.msra.mxu0 %v102
    %132 = vmatprep.subr.mxu0 0.0
    %133 = vmatpush1.msra.mxu0 %v103
    %134 = vmatprep.subr.mxu0 0.0
    %135 = vmatpush1.msra.mxu0 %v104
    %136 = vmatprep.subr.mxu0 0.0
    %137 = vmatpush1.msra.mxu0 %v105
    %138 = vmatprep.subr.mxu0 0.0
    %139 = vmatpush1.msra.mxu0 %v106
    %140 = vmatprep.subr.mxu0 0.0
    %141 = vmatpush1.msra.mxu0 %v107
    %142 = vmatprep.subr.mxu0 0.0
    %143 = vmatpush1.msra.mxu0 %v108
    %144 = vmatprep.subr.mxu0 0.0
    %145 = vmatpush1.msra.mxu0 %v109
    %146 = vmatprep.subr.mxu0 0.0
    %147 = vmatpush1.msra.mxu0 %v110
    %148 = vmatprep.subr.mxu0 0.0
    %149 = vmatpush1.msra.mxu0 %v111
    %150 = vmatprep.subr.mxu0 0.0
    %151 = vmatpush1.msra.mxu0 %v112
    %152 = vmatprep.subr.mxu0 0.0
    %153 = vmatpush1.msra.mxu0 0.0
    %154 = vmatprep.subr.mxu0 0.0
    %155 = vmatpush1.msra.mxu0 0.0
    %156 = vmatprep.subr.mxu0 0.0
    %157 = vmatpush1.msra.mxu0 0.0
    %158 = vmatprep.subr.mxu0 0.0
    %159 = vmatpush1.msra.mxu0 0.0
    %160 = vmatprep.subr.mxu0 0.0
    %161 = vmatpush1.msra.mxu0 0.0
    %162 = vmatprep.subr.mxu0 0.0
    %163 = vmatpush1.msra.mxu0 0.0
    %164 = vmatprep.subr.mxu0 0.0
    %165 = vmatpush1.msra.mxu0 0.0
    %166 = vmatprep.subr.mxu0 0.0
    %167 = vmatpush1.msra.mxu0 0.0
    %168 = vmatprep.subr.mxu0 0.0
    %169 = vmatpush1.msra.mxu0 0.0
    %170 = vmatprep.subr.mxu0 0.0
    %171 = vmatpush1.msra.mxu0 0.0
    %172 = vmatprep.subr.mxu0 0.0
    %173 = vmatpush1.msra.mxu0 0.0
    %174 = vmatprep.subr.mxu0 0.0
    %175 = vmatpush1.msra.mxu0 0.0
    %176 = vmatprep.subr.mxu0 0.0
    %177 = vmatpush1.msra.mxu0 0.0
    %178 = vmatprep.subr.mxu0 0.0
    %179 = vmatpush1.msra.mxu0 0.0
    %180 = vmatprep.subr.mxu0 0.0
    %181 = vmatpush1.msra.mxu0 0.0
    %182 = vmatprep.subr.mxu0 0.0
    %183 = vmatpush1.msra.mxu0 0.0
    %184 = vmatprep.mubr.f32.mxu0 0.0
    %185 = vmatmul.mubr.f32.gmra.mrb[0].mxu0 %v96
    %v186 = vpop.f32.mrb[0].mxu0
    %v187 = vadd.f32 %v118, %v186
    %v188 = vpop.f32.mrb[0].mxu0
    %189 = vdwg.mxu0
    %v190 = vmax.f32 %v187, 0.0
    %v191 = vld [vmem:[#allocation7] sm:$0xff]
    %v192 = vld [vmem:[#allocation7 + $0x8] sm:$0xff]
    %v193 = vld [vmem:[#allocation7 + $0x10] sm:$0xff]
    %v194 = vld [vmem:[#allocation7 + $0x18] sm:$0xff]
    %v195 = vld [vmem:[#allocation7 + $0x20] sm:$0xff]
    %v196 = vld [vmem:[#allocation7 + $0x28] sm:$0xff]
    %v197 = vld [vmem:[#allocation7 + $0x30] sm:$0xff]
    %v198 = vld [vmem:[#allocation7 + $0x38] sm:$0xff]
    %v199 = vld [vmem:[#allocation7 + $0x40] sm:$0xff]
    %v200 = vld [vmem:[#allocation7 + $0x48] sm:$0xff]
    %v201 = vld [vmem:[#allocation7 + $0x50] sm:$0xff]
    %v202 = vld [vmem:[#allocation7 + $0x58] sm:$0xff]
    %v203 = vld [vmem:[#allocation7 + $0x60] sm:$0xff]
    %v204 = vld [vmem:[#allocation7 + $0x68] sm:$0xff]
    %v205 = vld [vmem:[#allocation7 + $0x70] sm:$0xff]
    %v206 = vld [vmem:[#allocation7 + $0x78] sm:$0xff]
    %v207 = vld [vmem:[#allocation8] sm:$0xff]
    %v208 = vld [vmem:[#allocation8 + $0x8] sm:$0xff]
    %v209 = vld [vmem:[#allocation8 + $0x10] sm:$0xff]
    %v210 = vld [vmem:[#allocation8 + $0x18] sm:$0xff]
    %v211 = vld [vmem:[#allocation8 + $0x20] sm:$0xff]
    %v212 = vld [vmem:[#allocation8 + $0x28] sm:$0xff]
    %v213 = vld [vmem:[#allocation8 + $0x30] sm:$0xff]
    %v214 = vld [vmem:[#allocation8 + $0x38] sm:$0xff]
    %v215 = vld [vmem:[#allocation8 + $0x40] sm:$0xff]
    %v216 = vld [vmem:[#allocation8 + $0x48] sm:$0xff]
    %v217 = vld [vmem:[#allocation8 + $0x50] sm:$0xff]
    %v218 = vld [vmem:[#allocation8 + $0x58] sm:$0xff]
    %v219 = vld [vmem:[#allocation8 + $0x60] sm:$0xff]
    %v220 = vld [vmem:[#allocation8 + $0x68] sm:$0xff]
    %v221 = vld [vmem:[#allocation8 + $0x70] sm:$0xff]
    %v222 = vld [vmem:[#allocation8 + $0x78] sm:$0xff]
    %v223 = vld [vmem:[#allocation10] sm:$0xff]
    %v224 = vld [vmem:[#allocation10 + $0x8] sm:$0xff]
    %v225 = vld [vmem:[#allocation10 + $0x10] sm:$0xff]
    %v226 = vld [vmem:[#allocation10 + $0x18] sm:$0xff]
    %v227 = vld [vmem:[#allocation10 + $0x20] sm:$0xff]
    %v228 = vld [vmem:[#allocation10 + $0x28] sm:$0xff]
    %v229 = vld [vmem:[#allocation10 + $0x30] sm:$0xff]
    %v230 = vld [vmem:[#allocation10 + $0x38] sm:$0xff]
    %v231 = vld [vmem:[#allocation10 + $0x40] sm:$0xff]
    %v232 = vld [vmem:[#allocation10 + $0x48] sm:$0xff]
    %v233 = vld [vmem:[#allocation10 + $0x50] sm:$0xff]
    %v234 = vld [vmem:[#allocation10 + $0x58] sm:$0xff]
    %v235 = vld [vmem:[#allocation10 + $0x60] sm:$0xff]
    %v236 = vld [vmem:[#allocation10 + $0x68] sm:$0xff]
    %v237 = vld [vmem:[#allocation10 + $0x70] sm:$0xff]
    %v238 = vld [vmem:[#allocation10 + $0x78] sm:$0xff]
    %v239 = vld [vmem:[%s6] sm:$0x1]
    %v241 = vlaneseq
    %v242 = vshrl.u32 %v241, 7
    %v243 = vsub.s32 0, %v242
    %v244 = vrot.slane %v239, %v243
    %246 = vmatprep.subr.mxu0 0.0
    %247 = vmatpush1.msra.mxu0 %v191
    %248 = vmatprep.subr.mxu0 0.0
    %249 = vmatpush1.msra.mxu0 %v192
    %250 = vmatprep.subr.mxu0 0.0
    %251 = vmatpush1.msra.mxu0 %v193
    %252 = vmatprep.subr.mxu0 0.0
    %253 = vmatpush1.msra.mxu0 %v194
    %254 = vmatprep.subr.mxu0 0.0
    %255 = vmatpush1.msra.mxu0 %v195
    %256 = vmatprep.subr.mxu0 0.0
    %257 = vmatpush1.msra.mxu0 %v196
    %258 = vmatprep.subr.mxu0 0.0
    %259 = vmatpush1.msra.mxu0 %v197
    %260 = vmatprep.subr.mxu0 0.0
    %261 = vmatpush1.msra.mxu0 %v198
    %262 = vmatprep.subr.mxu0 0.0
    %263 = vmatpush1.msra.mxu0 %v199
    %264 = vmatprep.subr.mxu0 0.0
    %265 = vmatpush1.msra.mxu0 %v200
    %266 = vmatprep.subr.mxu0 0.0
    %267 = vmatpush1.msra.mxu0 %v201
    %268 = vmatprep.subr.mxu0 0.0
    %269 = vmatpush1.msra.mxu0 %v202
    %270 = vmatprep.subr.mxu0 0.0
    %271 = vmatpush1.msra.mxu0 %v203
    %272 = vmatprep.subr.mxu0 0.0
    %273 = vmatpush1.msra.mxu0 %v204
    %274 = vmatprep.subr.mxu0 0.0
    %275 = vmatpush1.msra.mxu0 %v205
    %276 = vmatprep.subr.mxu0 0.0
    %277 = vmatpush1.msra.mxu0 %v206
    %278 = vmatprep.subr.mxu0 0.0
    %279 = vmatpush1.msra.mxu0 0.0
    %280 = vmatprep.subr.mxu0 0.0
    %281 = vmatpush1.msra.mxu0 0.0
    %282 = vmatprep.subr.mxu0 0.0
    %283 = vmatpush1.msra.mxu0 0.0
    %284 = vmatprep.subr.mxu0 0.0
    %285 = vmatpush1.msra.mxu0 0.0
    %286 = vmatprep.subr.mxu0 0.0
    %287 = vmatpush1.msra.mxu0 0.0
    %288 = vmatprep.subr.mxu0 0.0
    %289 = vmatpush1.msra.mxu0 0.0
    %290 = vmatprep.subr.mxu0 0.0
    %291 = vmatpush1.msra.mxu0 0.0
    %292 = vmatprep.subr.mxu0 0.0
    %293 = vmatpush1.msra.mxu0 0.0
    %294 = vmatprep.subr.mxu0 0.0
    %295 = vmatpush1.msra.mxu0 0.0
    %296 = vmatprep.subr.mxu0 0.0
    %297 = vmatpush1.msra.mxu0 0.0
    %298 = vmatprep.subr.mxu0 0.0
    %299 = vmatpush1.msra.mxu0 0.0
    %300 = vmatprep.subr.mxu0 0.0
    %301 = vmatpush1.msra.mxu0 0.0
    %302 = vmatprep.subr.mxu0 0.0
    %303 = vmatpush1.msra.mxu0 0.0
    %304 = vmatprep.subr.mxu0 0.0
    %305 = vmatpush1.msra.mxu0 0.0
    %306 = vmatprep.subr.mxu0 0.0
    %307 = vmatpush1.msra.mxu0 0.0
    %308 = vmatprep.subr.mxu0 0.0
    %309 = vmatpush1.msra.mxu0 0.0
    %310 = vmatprep.mubr.f32.mxu0 0.0
    %311 = vmatmul.mubr.f32.gmra.mrb[0].mxu0 %v190
    %v312 = vpop.f32.mrb[0].mxu0
    %v313 = vadd.f32 0.0, %v312
    %v314 = vpop.f32.mrb[0].mxu0
    %315 = vdwg.mxu0
    %v316 = vsub.f32 %v313, %v244
    %317 = vmax.xlane.f32.xlu0 %v316
    %v318 = vpop.xlane.xlu0 %317
    %v319 = vrot.slane %v318, 4
    %v320 = vmax.f32 %v318, %v319
    %v321 = vrot.slane %v320, 2
    %v322 = vmax.f32 %v320, %v321
    %v323 = vrot.slane %v322, 1
    %v324 = vmax.f32 %v322, %v323
    %s325 = vtos %v324
    // While loop
    $region50: #{tpu_custom_call.1} parent=1 // loop_pre_header
      _
    $region51: #{tpu_custom_call.1} parent=1 // loop_header
      %s327 = sphi 0, %s824
      %v328 = vphi %v316, %v812
      %s329 = sphi %s325, %s823
      %s330 = sphi 1.0, %s814
      %v331 = vphi 0.0, %v813
      %p332 = scmp.lt.s32.totalorder %s327, 10
      %p333 = scmp.lt.f32.partialorder %s329, 1e-06
      %p334 = pneg %p333
      %p335 = pnand %p332, %p334
      %p336 = pneg %p335
    $region52: #{tpu_custom_call.1} parent=1 // loop_header_branch
      %338 = sbr.rel (%p335) target = $region56
    $region53: #{tpu_custom_call.1} parent=1 // loop_body
      %p339 = scmp.lt.f32.partialorder %s329, 1e-06
      %vm340 = vcmp.gt.f32.partialorder %v328, 0.0
      %v341 = vsel %vm340, 1, 0
      %v342 = vcvt.s32.f32 %v341
      %343 = vmatprep.subr.mxu0 0.0
      %344 = vmatpush1.msra.mxu0 %v223
      %345 = vmatprep.subr.mxu0 0.0
      %346 = vmatpush1.msra.mxu0 %v224
      %347 = vmatprep.subr.mxu0 0.0
      %348 = vmatpush1.msra.mxu0 %v225
      %349 = vmatprep.subr.mxu0 0.0
      %350 = vmatpush1.msra.mxu0 %v226
      %351 = vmatprep.subr.mxu0 0.0
      %352 = vmatpush1.msra.mxu0 %v227
      %353 = vmatprep.subr.mxu0 0.0
      %354 = vmatpush1.msra.mxu0 %v228
      %355 = vmatprep.subr.mxu0 0.0
      %356 = vmatpush1.msra.mxu0 %v229
      %357 = vmatprep.subr.mxu0 0.0
      %358 = vmatpush1.msra.mxu0 %v230
      %359 = vmatprep.subr.mxu0 0.0
      %360 = vmatpush1.msra.mxu0 %v231
      %361 = vmatprep.subr.mxu0 0.0
      %362 = vmatpush1.msra.mxu0 %v232
      %363 = vmatprep.subr.mxu0 0.0
      %364 = vmatpush1.msra.mxu0 %v233
      %365 = vmatprep.subr.mxu0 0.0
      %366 = vmatpush1.msra.mxu0 %v234
      %367 = vmatprep.subr.mxu0 0.0
      %368 = vmatpush1.msra.mxu0 %v235
      %369 = vmatprep.subr.mxu0 0.0
      %370 = vmatpush1.msra.mxu0 %v236
      %371 = vmatprep.subr.mxu0 0.0
      %372 = vmatpush1.msra.mxu0 %v237
      %373 = vmatprep.subr.mxu0 0.0
      %374 = vmatpush1.msra.mxu0 %v238
      %375 = vmatprep.subr.mxu0 0.0
      %376 = vmatpush1.msra.mxu0 0.0
      %377 = vmatprep.subr.mxu0 0.0
      %378 = vmatpush1.msra.mxu0 0.0
      %379 = vmatprep.subr.mxu0 0.0
      %380 = vmatpush1.msra.mxu0 0.0
      %381 = vmatprep.subr.mxu0 0.0
      %382 = vmatpush1.msra.mxu0 0.0
      %383 = vmatprep.subr.mxu0 0.0
      %384 = vmatpush1.msra.mxu0 0.0
      %385 = vmatprep.subr.mxu0 0.0
      %386 = vmatpush1.msra.mxu0 0.0
      %387 = vmatprep.subr.mxu0 0.0
      %388 = vmatpush1.msra.mxu0 0.0
      %389 = vmatprep.subr.mxu0 0.0
      %390 = vmatpush1.msra.mxu0 0.0
      %391 = vmatprep.subr.mxu0 0.0
      %392 = vmatpush1.msra.mxu0 0.0
      %393 = vmatprep.subr.mxu0 0.0
      %394 = vmatpush1.msra.mxu0 0.0
      %395 = vmatprep.subr.mxu0 0.0
      %396 = vmatpush1.msra.mxu0 0.0
      %397 = vmatprep.subr.mxu0 0.0
      %398 = vmatpush1.msra.mxu0 0.0
      %399 = vmatprep.subr.mxu0 0.0
      %400 = vmatpush1.msra.mxu0 0.0
      %401 = vmatprep.subr.mxu0 0.0
      %402 = vmatpush1.msra.mxu0 0.0
      %403 = vmatprep.subr.mxu0 0.0
      %404 = vmatpush1.msra.mxu0 0.0
      %405 = vmatprep.subr.mxu0 0.0
      %406 = vmatpush1.msra.mxu0 0.0
      %407 = vmatprep.mubr.f32.mxu0 0.0
      %408 = vmatmul.mubr.f32.gmra.mrb[0].mxu0 %v342
      %v409 = vpop.f32.mrb[0].mxu0
      %v410 = vadd.f32 0.0, %v409
      %v411 = vpop.f32.mrb[0].mxu0
      %412 = vdwg.mxu0
      %s413 = smul.f32 %s330, 0.01
      %v414 = vstv %s413
      %v415 = vmul.f32 %v414, %v410
      %v416 = vsub.f32 %v328, %v415
      %v417 = vstv %s330
      %v418 = vmul.f32 %v417, %v342
      %v419 = vadd.f32 %v331, %v418
      %s420 = smul.f32 %s330, 0.99
      %s421 = scalar_select %p339, 1, 0
      %v422 = vstv %s421
      %vm423 = vcmp.eq.s32.totalorder %v422, 1
      %v424 = vsel %vm423, %v328, %v416
      %v425 = vsel %vm423, %v331, %v419
      %s426 = scalar_select %p339, %s330, %s420
      %427 = vmax.xlane.f32.xlu0 %v424
      %v428 = vpop.xlane.xlu0 %427
      %v429 = vrot.slane %v428, 4
      %v430 = vmax.f32 %v428, %v429
      %v431 = vrot.slane %v430, 2
      %v432 = vmax.f32 %v430, %v431
      %v433 = vrot.slane %v432, 1
      %v434 = vmax.f32 %v432, %v433
      %s435 = vtos %v434
      %p436 = scmp.lt.f32.partialorder %s435, 1e-06
      %vm437 = vcmp.gt.f32.partialorder %v424, 0.0
      %v438 = vsel %vm437, 1, 0
      %v439 = vcvt.s32.f32 %v438
      %440 = vmatprep.subr.mxu0 0.0
      %441 = vmatpush1.msra.mxu0 %v223
      %442 = vmatprep.subr.mxu0 0.0
      %443 = vmatpush1.msra.mxu0 %v224
      %444 = vmatprep.subr.mxu0 0.0
      %445 = vmatpush1.msra.mxu0 %v225
      %446 = vmatprep.subr.mxu0 0.0
      %447 = vmatpush1.msra.mxu0 %v226
      %448 = vmatprep.subr.mxu0 0.0
      %449 = vmatpush1.msra.mxu0 %v227
      %450 = vmatprep.subr.mxu0 0.0
      %451 = vmatpush1.msra.mxu0 %v228
      %452 = vmatprep.subr.mxu0 0.0
      %453 = vmatpush1.msra.mxu0 %v229
      %454 = vmatprep.subr.mxu0 0.0
      %455 = vmatpush1.msra.mxu0 %v230
      %456 = vmatprep.subr.mxu0 0.0
      %457 = vmatpush1.msra.mxu0 %v231
      %458 = vmatprep.subr.mxu0 0.0
      %459 = vmatpush1.msra.mxu0 %v232
      %460 = vmatprep.subr.mxu0 0.0
      %461 = vmatpush1.msra.mxu0 %v233
      %462 = vmatprep.subr.mxu0 0.0
      %463 = vmatpush1.msra.mxu0 %v234
      %464 = vmatprep.subr.mxu0 0.0
      %465 = vmatpush1.msra.mxu0 %v235
      %466 = vmatprep.subr.mxu0 0.0
      %467 = vmatpush1.msra.mxu0 %v236
      %468 = vmatprep.subr.mxu0 0.0
      %469 = vmatpush1.msra.mxu0 %v237
      %470 = vmatprep.subr.mxu0 0.0
      %471 = vmatpush1.msra.mxu0 %v238
      %472 = vmatprep.subr.mxu0 0.0
      %473 = vmatpush1.msra.mxu0 0.0
      %474 = vmatprep.subr.mxu0 0.0
      %475 = vmatpush1.msra.mxu0 0.0
      %476 = vmatprep.subr.mxu0 0.0
      %477 = vmatpush1.msra.mxu0 0.0
      %478 = vmatprep.subr.mxu0 0.0
      %479 = vmatpush1.msra.mxu0 0.0
      %480 = vmatprep.subr.mxu0 0.0
      %481 = vmatpush1.msra.mxu0 0.0
      %482 = vmatprep.subr.mxu0 0.0
      %483 = vmatpush1.msra.mxu0 0.0
      %484 = vmatprep.subr.mxu0 0.0
      %485 = vmatpush1.msra.mxu0 0.0
      %486 = vmatprep.subr.mxu0 0.0
      %487 = vmatpush1.msra.mxu0 0.0
      %488 = vmatprep.subr.mxu0 0.0
      %489 = vmatpush1.msra.mxu0 0.0
      %490 = vmatprep.subr.mxu0 0.0
      %491 = vmatpush1.msra.mxu0 0.0
      %492 = vmatprep.subr.mxu0 0.0
      %493 = vmatpush1.msra.mxu0 0.0
      %494 = vmatprep.subr.mxu0 0.0
      %495 = vmatpush1.msra.mxu0 0.0
      %496 = vmatprep.subr.mxu0 0.0
      %497 = vmatpush1.msra.mxu0 0.0
      %498 = vmatprep.subr.mxu0 0.0
      %499 = vmatpush1.msra.mxu0 0.0
      %500 = vmatprep.subr.mxu0 0.0
      %501 = vmatpush1.msra.mxu0 0.0
      %502 = vmatprep.subr.mxu0 0.0
      %503 = vmatpush1.msra.mxu0 0.0
      %504 = vmatprep.mubr.f32.mxu0 0.0
      %505 = vmatmul.mubr.f32.gmra.mrb[0].mxu0 %v439
      %v506 = vpop.f32.mrb[0].mxu0
      %v507 = vadd.f32 0.0, %v506
      %v508 = vpop.f32.mrb[0].mxu0
      %509 = vdwg.mxu0
      %s510 = smul.f32 %s426, 0.01
      %v511 = vstv %s510
      %v512 = vmul.f32 %v511, %v507
      %v513 = vsub.f32 %v424, %v512
      %v514 = vstv %s426
      %v515 = vmul.f32 %v514, %v439
      %v516 = vadd.f32 %v425, %v515
      %s517 = smul.f32 %s426, 0.99
      %s518 = scalar_select %p436, 1, 0
      %v519 = vstv %s518
      %vm520 = vcmp.eq.s32.totalorder %v519, 1
      %v521 = vsel %vm520, %v424, %v513
      %v522 = vsel %vm520, %v425, %v516
      %s523 = scalar_select %p436, %s426, %s517
      %524 = vmax.xlane.f32.xlu0 %v521
      %v525 = vpop.xlane.xlu0 %524
      %v526 = vrot.slane %v525, 4
      %v527 = vmax.f32 %v525, %v526
      %v528 = vrot.slane %v527, 2
      %v529 = vmax.f32 %v527, %v528
      %v530 = vrot.slane %v529, 1
      %v531 = vmax.f32 %v529, %v530
      %s532 = vtos %v531
      %p533 = scmp.lt.f32.partialorder %s532, 1e-06
      %vm534 = vcmp.gt.f32.partialorder %v521, 0.0
      %v535 = vsel %vm534, 1, 0
      %v536 = vcvt.s32.f32 %v535
      %537 = vmatprep.subr.mxu0 0.0
      %538 = vmatpush1.msra.mxu0 %v223
      %539 = vmatprep.subr.mxu0 0.0
      %540 = vmatpush1.msra.mxu0 %v224
      %541 = vmatprep.subr.mxu0 0.0
      %542 = vmatpush1.msra.mxu0 %v225
      %543 = vmatprep.subr.mxu0 0.0
      %544 = vmatpush1.msra.mxu0 %v226
      %545 = vmatprep.subr.mxu0 0.0
      %546 = vmatpush1.msra.mxu0 %v227
      %547 = vmatprep.subr.mxu0 0.0
      %548 = vmatpush1.msra.mxu0 %v228
      %549 = vmatprep.subr.mxu0 0.0
      %550 = vmatpush1.msra.mxu0 %v229
      %551 = vmatprep.subr.mxu0 0.0
      %552 = vmatpush1.msra.mxu0 %v230
      %553 = vmatprep.subr.mxu0 0.0
      %554 = vmatpush1.msra.mxu0 %v231
      %555 = vmatprep.subr.mxu0 0.0
      %556 = vmatpush1.msra.mxu0 %v232
      %557 = vmatprep.subr.mxu0 0.0
      %558 = vmatpush1.msra.mxu0 %v233
      %559 = vmatprep.subr.mxu0 0.0
      %560 = vmatpush1.msra.mxu0 %v234
      %561 = vmatprep.subr.mxu0 0.0
      %562 = vmatpush1.msra.mxu0 %v235
      %563 = vmatprep.subr.mxu0 0.0
      %564 = vmatpush1.msra.mxu0 %v236
      %565 = vmatprep.subr.mxu0 0.0
      %566 = vmatpush1.msra.mxu0 %v237
      %567 = vmatprep.subr.mxu0 0.0
      %568 = vmatpush1.msra.mxu0 %v238
      %569 = vmatprep.subr.mxu0 0.0
      %570 = vmatpush1.msra.mxu0 0.0
      %571 = vmatprep.subr.mxu0 0.0
      %572 = vmatpush1.msra.mxu0 0.0
      %573 = vmatprep.subr.mxu0 0.0
      %574 = vmatpush1.msra.mxu0 0.0
      %575 = vmatprep.subr.mxu0 0.0
      %576 = vmatpush1.msra.mxu0 0.0
      %577 = vmatprep.subr.mxu0 0.0
      %578 = vmatpush1.msra.mxu0 0.0
      %579 = vmatprep.subr.mxu0 0.0
      %580 = vmatpush1.msra.mxu0 0.0
      %581 = vmatprep.subr.mxu0 0.0
      %582 = vmatpush1.msra.mxu0 0.0
      %583 = vmatprep.subr.mxu0 0.0
      %584 = vmatpush1.msra.mxu0 0.0
      %585 = vmatprep.subr.mxu0 0.0
      %586 = vmatpush1.msra.mxu0 0.0
      %587 = vmatprep.subr.mxu0 0.0
      %588 = vmatpush1.msra.mxu0 0.0
      %589 = vmatprep.subr.mxu0 0.0
      %590 = vmatpush1.msra.mxu0 0.0
      %591 = vmatprep.subr.mxu0 0.0
      %592 = vmatpush1.msra.mxu0 0.0
      %593 = vmatprep.subr.mxu0 0.0
      %594 = vmatpush1.msra.mxu0 0.0
      %595 = vmatprep.subr.mxu0 0.0
      %596 = vmatpush1.msra.mxu0 0.0
      %597 = vmatprep.subr.mxu0 0.0
      %598 = vmatpush1.msra.mxu0 0.0
      %599 = vmatprep.subr.mxu0 0.0
      %600 = vmatpush1.msra.mxu0 0.0
      %601 = vmatprep.mubr.f32.mxu0 0.0
      %602 = vmatmul.mubr.f32.gmra.mrb[0].mxu0 %v536
      %v603 = vpop.f32.mrb[0].mxu0
      %v604 = vadd.f32 0.0, %v603
      %v605 = vpop.f32.mrb[0].mxu0
      %606 = vdwg.mxu0
      %s607 = smul.f32 %s523, 0.01
      %v608 = vstv %s607
      %v609 = vmul.f32 %v608, %v604
      %v610 = vsub.f32 %v521, %v609
      %v611 = vstv %s523
      %v612 = vmul.f32 %v611, %v536
      %v613 = vadd.f32 %v522, %v612
      %s614 = smul.f32 %s523, 0.99
      %s615 = scalar_select %p533, 1, 0
      %v616 = vstv %s615
      %vm617 = vcmp.eq.s32.totalorder %v616, 1
      %v618 = vsel %vm617, %v521, %v610
      %v619 = vsel %vm617, %v522, %v613
      %s620 = scalar_select %p533, %s523, %s614
      %621 = vmax.xlane.f32.xlu0 %v618
      %v622 = vpop.xlane.xlu0 %621
      %v623 = vrot.slane %v622, 4
      %v624 = vmax.f32 %v622, %v623
      %v625 = vrot.slane %v624, 2
      %v626 = vmax.f32 %v624, %v625
      %v627 = vrot.slane %v626, 1
      %v628 = vmax.f32 %v626, %v627
      %s629 = vtos %v628
      %p630 = scmp.lt.f32.partialorder %s629, 1e-06
      %vm631 = vcmp.gt.f32.partialorder %v618, 0.0
      %v632 = vsel %vm631, 1, 0
      %v633 = vcvt.s32.f32 %v632
      %634 = vmatprep.subr.mxu0 0.0
      %635 = vmatpush1.msra.mxu0 %v223
      %636 = vmatprep.subr.mxu0 0.0
      %637 = vmatpush1.msra.mxu0 %v224
      %638 = vmatprep.subr.mxu0 0.0
      %639 = vmatpush1.msra.mxu0 %v225
      %640 = vmatprep.subr.mxu0 0.0
      %641 = vmatpush1.msra.mxu0 %v226
      %642 = vmatprep.subr.mxu0 0.0
      %643 = vmatpush1.msra.mxu0 %v227
      %644 = vmatprep.subr.mxu0 0.0
      %645 = vmatpush1.msra.mxu0 %v228
      %646 = vmatprep.subr.mxu0 0.0
      %647 = vmatpush1.msra.mxu0 %v229
      %648 = vmatprep.subr.mxu0 0.0
      %649 = vmatpush1.msra.mxu0 %v230
      %650 = vmatprep.subr.mxu0 0.0
      %651 = vmatpush1.msra.mxu0 %v231
      %652 = vmatprep.subr.mxu0 0.0
      %653 = vmatpush1.msra.mxu0 %v232
      %654 = vmatprep.subr.mxu0 0.0
      %655 = vmatpush1.msra.mxu0 %v233
      %656 = vmatprep.subr.mxu0 0.0
      %657 = vmatpush1.msra.mxu0 %v234
      %658 = vmatprep.subr.mxu0 0.0
      %659 = vmatpush1.msra.mxu0 %v235
      %660 = vmatprep.subr.mxu0 0.0
      %661 = vmatpush1.msra.mxu0 %v236
      %662 = vmatprep.subr.mxu0 0.0
      %663 = vmatpush1.msra.mxu0 %v237
      %664 = vmatprep.subr.mxu0 0.0
      %665 = vmatpush1.msra.mxu0 %v238
      %666 = vmatprep.subr.mxu0 0.0
      %667 = vmatpush1.msra.mxu0 0.0
      %668 = vmatprep.subr.mxu0 0.0
      %669 = vmatpush1.msra.mxu0 0.0
      %670 = vmatprep.subr.mxu0 0.0
      %671 = vmatpush1.msra.mxu0 0.0
      %672 = vmatprep.subr.mxu0 0.0
      %673 = vmatpush1.msra.mxu0 0.0
      %674 = vmatprep.subr.mxu0 0.0
      %675 = vmatpush1.msra.mxu0 0.0
      %676 = vmatprep.subr.mxu0 0.0
      %677 = vmatpush1.msra.mxu0 0.0
      %678 = vmatprep.subr.mxu0 0.0
      %679 = vmatpush1.msra.mxu0 0.0
      %680 = vmatprep.subr.mxu0 0.0
      %681 = vmatpush1.msra.mxu0 0.0
      %682 = vmatprep.subr.mxu0 0.0
      %683 = vmatpush1.msra.mxu0 0.0
      %684 = vmatprep.subr.mxu0 0.0
      %685 = vmatpush1.msra.mxu0 0.0
      %686 = vmatprep.subr.mxu0 0.0
      %687 = vmatpush1.msra.mxu0 0.0
      %688 = vmatprep.subr.mxu0 0.0
      %689 = vmatpush1.msra.mxu0 0.0
      %690 = vmatprep.subr.mxu0 0.0
      %691 = vmatpush1.msra.mxu0 0.0
      %692 = vmatprep.subr.mxu0 0.0
      %693 = vmatpush1.msra.mxu0 0.0
      %694 = vmatprep.subr.mxu0 0.0
      %695 = vmatpush1.msra.mxu0 0.0
      %696 = vmatprep.subr.mxu0 0.0
      %697 = vmatpush1.msra.mxu0 0.0
      %698 = vmatprep.mubr.f32.mxu0 0.0
      %699 = vmatmul.mubr.f32.gmra.mrb[0].mxu0 %v633
      %v700 = vpop.f32.mrb[0].mxu0
      %v701 = vadd.f32 0.0, %v700
      %v702 = vpop.f32.mrb[0].mxu0
      %703 = vdwg.mxu0
      %s704 = smul.f32 %s620, 0.01
      %v705 = vstv %s704
      %v706 = vmul.f32 %v705, %v701
      %v707 = vsub.f32 %v618, %v706
      %v708 = vstv %s620
      %v709 = vmul.f32 %v708, %v633
      %v710 = vadd.f32 %v619, %v709
      %s711 = smul.f32 %s620, 0.99
      %s712 = scalar_select %p630, 1, 0
      %v713 = vstv %s712
      %vm714 = vcmp.eq.s32.totalorder %v713, 1
      %v715 = vsel %vm714, %v618, %v707
      %v716 = vsel %vm714, %v619, %v710
      %s717 = scalar_select %p630, %s620, %s711
      %718 = vmax.xlane.f32.xlu0 %v715
      %v719 = vpop.xlane.xlu0 %718
      %v720 = vrot.slane %v719, 4
      %v721 = vmax.f32 %v719, %v720
      %v722 = vrot.slane %v721, 2
      %v723 = vmax.f32 %v721, %v722
      %v724 = vrot.slane %v723, 1
      %v725 = vmax.f32 %v723, %v724
      %s726 = vtos %v725
      %p727 = scmp.lt.f32.partialorder %s726, 1e-06
      %vm728 = vcmp.gt.f32.partialorder %v715, 0.0
      %v729 = vsel %vm728, 1, 0
      %v730 = vcvt.s32.f32 %v729
      %731 = vmatprep.subr.mxu0 0.0
      %732 = vmatpush1.msra.mxu0 %v223
      %733 = vmatprep.subr.mxu0 0.0
      %734 = vmatpush1.msra.mxu0 %v224
      %735 = vmatprep.subr.mxu0 0.0
      %736 = vmatpush1.msra.mxu0 %v225
      %737 = vmatprep.subr.mxu0 0.0
      %738 = vmatpush1.msra.mxu0 %v226
      %739 = vmatprep.subr.mxu0 0.0
      %740 = vmatpush1.msra.mxu0 %v227
      %741 = vmatprep.subr.mxu0 0.0
      %742 = vmatpush1.msra.mxu0 %v228
      %743 = vmatprep.subr.mxu0 0.0
      %744 = vmatpush1.msra.mxu0 %v229
      %745 = vmatprep.subr.mxu0 0.0
      %746 = vmatpush1.msra.mxu0 %v230
      %747 = vmatprep.subr.mxu0 0.0
      %748 = vmatpush1.msra.mxu0 %v231
      %749 = vmatprep.subr.mxu0 0.0
      %750 = vmatpush1.msra.mxu0 %v232
      %751 = vmatprep.subr.mxu0 0.0
      %752 = vmatpush1.msra.mxu0 %v233
      %753 = vmatprep.subr.mxu0 0.0
      %754 = vmatpush1.msra.mxu0 %v234
      %755 = vmatprep.subr.mxu0 0.0
      %756 = vmatpush1.msra.mxu0 %v235
      %757 = vmatprep.subr.mxu0 0.0
      %758 = vmatpush1.msra.mxu0 %v236
      %759 = vmatprep.subr.mxu0 0.0
      %760 = vmatpush1.msra.mxu0 %v237
      %761 = vmatprep.subr.mxu0 0.0
      %762 = vmatpush1.msra.mxu0 %v238
      %763 = vmatprep.subr.mxu0 0.0
      %764 = vmatpush1.msra.mxu0 0.0
      %765 = vmatprep.subr.mxu0 0.0
      %766 = vmatpush1.msra.mxu0 0.0
      %767 = vmatprep.subr.mxu0 0.0
      %768 = vmatpush1.msra.mxu0 0.0
      %769 = vmatprep.subr.mxu0 0.0
      %770 = vmatpush1.msra.mxu0 0.0
      %771 = vmatprep.subr.mxu0 0.0
      %772 = vmatpush1.msra.mxu0 0.0
      %773 = vmatprep.subr.mxu0 0.0
      %774 = vmatpush1.msra.mxu0 0.0
      %775 = vmatprep.subr.mxu0 0.0
      %776 = vmatpush1.msra.mxu0 0.0
      %777 = vmatprep.subr.mxu0 0.0
      %778 = vmatpush1.msra.mxu0 0.0
      %779 = vmatprep.subr.mxu0 0.0
      %780 = vmatpush1.msra.mxu0 0.0
      %781 = vmatprep.subr.mxu0 0.0
      %782 = vmatpush1.msra.mxu0 0.0
      %783 = vmatprep.subr.mxu0 0.0
      %784 = vmatpush1.msra.mxu0 0.0
      %785 = vmatprep.subr.mxu0 0.0
      %786 = vmatpush1.msra.mxu0 0.0
      %787 = vmatprep.subr.mxu0 0.0
      %788 = vmatpush1.msra.mxu0 0.0
      %789 = vmatprep.subr.mxu0 0.0
      %790 = vmatpush1.msra.mxu0 0.0
      %791 = vmatprep.subr.mxu0 0.0
      %792 = vmatpush1.msra.mxu0 0.0
      %793 = vmatprep.subr.mxu0 0.0
      %794 = vmatpush1.msra.mxu0 0.0
      %795 = vmatprep.mubr.f32.mxu0 0.0
      %796 = vmatmul.mubr.f32.gmra.mrb[0].mxu0 %v730
      %v797 = vpop.f32.mrb[0].mxu0
      %v798 = vadd.f32 0.0, %v797
      %v799 = vpop.f32.mrb[0].mxu0
      %800 = vdwg.mxu0
      %s801 = smul.f32 %s717, 0.01
      %v802 = vstv %s801
      %v803 = vmul.f32 %v802, %v798
      %v804 = vsub.f32 %v715, %v803
      %v805 = vstv %s717
      %v806 = vmul.f32 %v805, %v730
      %v807 = vadd.f32 %v716, %v806
      %s808 = smul.f32 %s717, 0.99
      %s809 = scalar_select %p727, 1, 0
      %v810 = vstv %s809
      %vm811 = vcmp.eq.s32.totalorder %v810, 1
      %v812 = vsel %vm811, %v715, %v804
      %v813 = vsel %vm811, %v716, %v807
      %s814 = scalar_select %p727, %s717, %s808
      %815 = vmax.xlane.f32.xlu0 %v812
      %v816 = vpop.xlane.xlu0 %815
      %v817 = vrot.slane %v816, 4
      %v818 = vmax.f32 %v816, %v817
      %v819 = vrot.slane %v818, 2
      %v820 = vmax.f32 %v818, %v819
      %v821 = vrot.slane %v820, 1
      %v822 = vmax.f32 %v820, %v821
      %s823 = vtos %v822
      %s824 = sadd.s32 %s327, 1
    $region54: #{tpu_custom_call.1} parent=1 // loop_footer
      _
    $region55: #{tpu_custom_call.1} parent=1 // loop_footer_branch
      %326 = sbr.rel target = $region51
    $region56: #{tpu_custom_call.1} parent=1 // loop_exit
      _
    %825 = vmatprep.subr.mxu0 0.0
    %826 = vmatpush1.msra.mxu0 %v207
    %827 = vmatprep.subr.mxu0 0.0
    %828 = vmatpush1.msra.mxu0 %v208
    %829 = vmatprep.subr.mxu0 0.0
    %830 = vmatpush1.msra.mxu0 %v209
    %831 = vmatprep.subr.mxu0 0.0
    %832 = vmatpush1.msra.mxu0 %v210
    %833 = vmatprep.subr.mxu0 0.0
    %834 = vmatpush1.msra.mxu0 %v211
    %835 = vmatprep.subr.mxu0 0.0
    %836 = vmatpush1.msra.mxu0 %v212
    %837 = vmatprep.subr.mxu0 0.0
    %838 = vmatpush1.msra.mxu0 %v213
    %839 = vmatprep.subr.mxu0 0.0
    %840 = vmatpush1.msra.mxu0 %v214
    %841 = vmatprep.subr.mxu0 0.0
    %842 = vmatpush1.msra.mxu0 %v215
    %843 = vmatprep.subr.mxu0 0.0
    %844 = vmatpush1.msra.mxu0 %v216
    %845 = vmatprep.subr.mxu0 0.0
    %846 = vmatpush1.msra.mxu0 %v217
    %847 = vmatprep.subr.mxu0 0.0
    %848 = vmatpush1.msra.mxu0 %v218
    %849 = vmatprep.subr.mxu0 0.0
    %850 = vmatpush1.msra.mxu0 %v219
    %851 = vmatprep.subr.mxu0 0.0
    %852 = vmatpush1.msra.mxu0 %v220
    %853 = vmatprep.subr.mxu0 0.0
    %854 = vmatpush1.msra.mxu0 %v221
    %855 = vmatprep.subr.mxu0 0.0
    %856 = vmatpush1.msra.mxu0 %v222
    %857 = vmatprep.subr.mxu0 0.0
    %858 = vmatpush1.msra.mxu0 0.0
    %859 = vmatprep.subr.mxu0 0.0
    %860 = vmatpush1.msra.mxu0 0.0
    %861 = vmatprep.subr.mxu0 0.0
    %862 = vmatpush1.msra.mxu0 0.0
    %863 = vmatprep.subr.mxu0 0.0
    %864 = vmatpush1.msra.mxu0 0.0
    %865 = vmatprep.subr.mxu0 0.0
    %866 = vmatpush1.msra.mxu0 0.0
    %867 = vmatprep.subr.mxu0 0.0
    %868 = vmatpush1.msra.mxu0 0.0
    %869 = vmatprep.subr.mxu0 0.0
    %870 = vmatpush1.msra.mxu0 0.0
    %871 = vmatprep.subr.mxu0 0.0
    %872 = vmatpush1.msra.mxu0 0.0
    %873 = vmatprep.subr.mxu0 0.0
    %874 = vmatpush1.msra.mxu0 0.0
    %875 = vmatprep.subr.mxu0 0.0
    %876 = vmatpush1.msra.mxu0 0.0
    %877 = vmatprep.subr.mxu0 0.0
    %878 = vmatpush1.msra.mxu0 0.0
    %879 = vmatprep.subr.mxu0 0.0
    %880 = vmatpush1.msra.mxu0 0.0
    %881 = vmatprep.subr.mxu0 0.0
    %882 = vmatpush1.msra.mxu0 0.0
    %883 = vmatprep.subr.mxu0 0.0
    %884 = vmatpush1.msra.mxu0 0.0
    %885 = vmatprep.subr.mxu0 0.0
    %886 = vmatpush1.msra.mxu0 0.0
    %887 = vmatprep.subr.mxu0 0.0
    %888 = vmatpush1.msra.mxu0 0.0
    %889 = vmatprep.mubr.f32.mxu0 0.0
    %890 = vmatmul.mubr.f32.gmra.mrb[0].mxu0 %v331
    %v891 = vpop.f32.mrb[0].mxu0
    %v892 = vadd.f32 0.0, %v891
    %v893 = vpop.f32.mrb[0].mxu0
    %894 = vdwg.mxu0
    %v895 = vmul.f32 %v892, 0.01
    %v896 = vsub.f32 %v190, %v895
    %897 = vmatprep.subr.mxu0 0.0
    %898 = vmatpush1.msra.mxu0 %v191
    %899 = vmatprep.subr.mxu0 0.0
    %900 = vmatpush1.msra.mxu0 %v192
    %901 = vmatprep.subr.mxu0 0.0
    %902 = vmatpush1.msra.mxu0 %v193
    %903 = vmatprep.subr.mxu0 0.0
    %904 = vmatpush1.msra.mxu0 %v194
    %905 = vmatprep.subr.mxu0 0.0
    %906 = vmatpush1.msra.mxu0 %v195
    %907 = vmatprep.subr.mxu0 0.0
    %908 = vmatpush1.msra.mxu0 %v196
    %909 = vmatprep.subr.mxu0 0.0
    %910 = vmatpush1.msra.mxu0 %v197
    %911 = vmatprep.subr.mxu0 0.0
    %912 = vmatpush1.msra.mxu0 %v198
    %913 = vmatprep.subr.mxu0 0.0
    %914 = vmatpush1.msra.mxu0 %v199
    %915 = vmatprep.subr.mxu0 0.0
    %916 = vmatpush1.msra.mxu0 %v200
    %917 = vmatprep.subr.mxu0 0.0
    %918 = vmatpush1.msra.mxu0 %v201
    %919 = vmatprep.subr.mxu0 0.0
    %920 = vmatpush1.msra.mxu0 %v202
    %921 = vmatprep.subr.mxu0 0.0
    %922 = vmatpush1.msra.mxu0 %v203
    %923 = vmatprep.subr.mxu0 0.0
    %924 = vmatpush1.msra.mxu0 %v204
    %925 = vmatprep.subr.mxu0 0.0
    %926 = vmatpush1.msra.mxu0 %v205
    %927 = vmatprep.subr.mxu0 0.0
    %928 = vmatpush1.msra.mxu0 %v206
    %929 = vmatprep.subr.mxu0 0.0
    %930 = vmatpush1.msra.mxu0 0.0
    %931 = vmatprep.subr.mxu0 0.0
    %932 = vmatpush1.msra.mxu0 0.0
    %933 = vmatprep.subr.mxu0 0.0
    %934 = vmatpush1.msra.mxu0 0.0
    %935 = vmatprep.subr.mxu0 0.0
    %936 = vmatpush1.msra.mxu0 0.0
    %937 = vmatprep.subr.mxu0 0.0
    %938 = vmatpush1.msra.mxu0 0.0
    %939 = vmatprep.subr.mxu0 0.0
    %940 = vmatpush1.msra.mxu0 0.0
    %941 = vmatprep.subr.mxu0 0.0
    %942 = vmatpush1.msra.mxu0 0.0
    %943 = vmatprep.subr.mxu0 0.0
    %944 = vmatpush1.msra.mxu0 0.0
    %945 = vmatprep.subr.mxu0 0.0
    %946 = vmatpush1.msra.mxu0 0.0
    %947 = vmatprep.subr.mxu0 0.0
    %948 = vmatpush1.msra.mxu0 0.0
    %949 = vmatprep.subr.mxu0 0.0
    %950 = vmatpush1.msra.mxu0 0.0
    %951 = vmatprep.subr.mxu0 0.0
    %952 = vmatpush1.msra.mxu0 0.0
    %953 = vmatprep.subr.mxu0 0.0
    %954 = vmatpush1.msra.mxu0 0.0
    %955 = vmatprep.subr.mxu0 0.0
    %956 = vmatpush1.msra.mxu0 0.0
    %957 = vmatprep.subr.mxu0 0.0
    %958 = vmatpush1.msra.mxu0 0.0
    %959 = vmatprep.subr.mxu0 0.0
    %960 = vmatpush1.msra.mxu0 0.0
    %961 = vmatprep.mubr.f32.mxu0 0.0
    %962 = vmatmul.mubr.f32.gmra.mrb[0].mxu0 %v896
    %v963 = vpop.f32.mrb[0].mxu0
    %v964 = vadd.f32 0.0, %v963
    %v965 = vpop.f32.mrb[0].mxu0
    %966 = vdwg.mxu0
    %v967 = vsub.f32 %v964, %v244
    %968 = vst [vmem:[#allocation11] sm:$0xff] %v896
    %v969 = vmax.f32 %v967, 0.0
    %970 = vst [vmem:[#allocation12] sm:$0xff] %v969
    // Predicated region
    $region57: #{tpu_custom_call.1} parent=1 // pred_check
      _
    $region58: #{tpu_custom_call.1} parent=1 // pred_check_branch
      %972 = sbr.rel (0) target = $region60
    $region59: #{tpu_custom_call.1} parent=1 // pred_region
      %s974 = ssub.s32 128, 128
      %975 = vsyncadd [#allocation4], %s974
      %s977 = sshll.u32 [#allocation11], 4
      %s978 = int_to_ptr.vmem [resolvable:$true] %s977
      %980 = dma.vmem_to_hbm [thread:$0]  %s978, 128, %s7, [#allocation4]
    $region60: #{tpu_custom_call.1} parent=1 // pred_fallthru
      _
    // Predicated region
    $region61: #{tpu_custom_call.1} parent=1 // pred_check
      _
    $region62: #{tpu_custom_call.1} parent=1 // pred_check_branch
      %982 = sbr.rel (0) target = $region64
    $region63: #{tpu_custom_call.1} parent=1 // pred_region
      %s984 = ssub.s32 128, 128
      %985 = vsyncadd [#allocation13], %s984
      %s987 = sshll.u32 [#allocation12], 4
      %s988 = int_to_ptr.vmem [resolvable:$true] %s987
      %990 = dma.vmem_to_hbm [thread:$0]  %s988, 128, %s8, [#allocation13]
    $region64: #{tpu_custom_call.1} parent=1 // pred_fallthru
      _
    // Predicated region
    $region65: #{tpu_custom_call.1} parent=1 // pred_check
      _
    $region66: #{tpu_custom_call.1} parent=1 // pred_check_branch
      %992 = sbr.rel (0) target = $region68
    $region67: #{tpu_custom_call.1} parent=1 // pred_region
      %993 = dma.done [#allocation4], 128
    $region68: #{tpu_custom_call.1} parent=1 // pred_fallthru
      _
    // Predicated region
    $region69: #{tpu_custom_call.1} parent=1 // pred_check
      _
    $region70: #{tpu_custom_call.1} parent=1 // pred_check_branch
      %995 = sbr.rel (0) target = $region72
    $region71: #{tpu_custom_call.1} parent=1 // pred_region
      %996 = dma.done [#allocation13], 128
    $region72: #{tpu_custom_call.1} parent=1 // pred_fallthru
      _
    %997 = vsyncpa [#allocation3], 1
    %998 = vsyncpa [#allocation6], 1
    %999 = vsyncpa [#allocation9], 1
    %1000 = vsyncpa [#allocation4], 1
    %1001 = vsyncpa [#allocation13], 1

</llo_original>
